<compile_context>
chip_gen: v7x
topology: tpu7x:2x2x1
jax: 0.10.0
libtpu: 0.0.40
codegen_flags: <defaults>
</compile_context>

<pallas_src>
import jax
import jax.numpy as jnp
import numpy as np
from jax.experimental import pallas as pl
from jax.experimental.pallas import tpu as pltpu


def bignn_kernel(has_edges_ref,                    # SMEM [V] int32 (scalar prefetch)
                 x_ref,                            # [TILE_N, H] f32  (residual / passthrough)
                 fw_adj_ref, bw_adj_ref,           # [V, TILE_N, N] int8 (streamed)
                 xw_ref,                           # [N, V*H] bf16   (resident; X@W, bw|fw per view)
                 b_bw_ref, b_fw_ref,               # [V, H2] f32
                 w_lin_ref,                        # [H, H] bf16
                 b_lin_ref,                        # [1, H] f32
                 out_ref,                          # [TILE_N, H] f32
                 acc_ref):                         # VMEM scratch [TILE_N, H] f32
    V = fw_adj_ref.shape[0]
    H = x_ref.shape[1]
    H2 = H // 2

    x_f32 = x_ref[...]
    acc_ref[...] = jnp.zeros_like(acc_ref)         # fresh running sum for this row tile

    for i in range(V):                             # static unroll; V is small

        @pl.when(has_edges_ref[i] != 0)
        def _(i=i):
            # int8 adjacency -> f32 -> bf16 on the VPU after the block lands in VMEM.
            bw_a = bw_adj_ref[i].astype(jnp.float32).astype(jnp.bfloat16)   # [TILE_N, N]
            fw_a = fw_adj_ref[i].astype(jnp.float32).astype(jnp.bfloat16)
            # Pre-fused X@W: per view, columns [0:H2] = X@W_bw_i, [H2:H] = X@W_fw_i.
            xw_bw = xw_ref[:, i * H: i * H + H2]                            # [N, H2] bf16
            xw_fw = xw_ref[:, i * H + H2: (i + 1) * H]
            y_bw = jnp.dot(bw_a, xw_bw, preferred_element_type=jnp.float32)  # [TILE_N, H2] f32
            y_fw = jnp.dot(fw_a, xw_fw, preferred_element_type=jnp.float32)
            # torch.cat([bw_outs, fw_outs], -1) realized as half-width accumulation
            # (no concatenate copy, no full-block RMW per view).
            acc_ref[:, :H2] += jnp.maximum(y_bw + b_bw_ref[i], 0.0)
            acc_ref[:, H2:] += jnp.maximum(y_fw + b_fw_ref[i], 0.0)

        @pl.when(has_edges_ref[i] == 0)
        def _():
            # empty-edge fallback: dropout(inps) == inps in eval mode
            acc_ref[...] += x_f32

    # feats = linear1(act(sum_i out_i)) + inps   (single write to out_ref)
    act = jnp.maximum(acc_ref[...], 0.0)
    feats = jnp.dot(act.astype(jnp.bfloat16), w_lin_ref[...],
                    preferred_element_type=jnp.float32) + b_lin_ref[...]
    out_ref[...] = (feats + x_f32).astype(out_ref.dtype)


def prepare_bignn_graph(fw_adjs, bw_adjs):
    """One-time per-graph prep (NOT per forward call): binarize adjacency to
    int8 (halves streamed HBM bytes vs bf16) and compute per-view edge flags."""
    fw_bin = fw_adjs != 0
    bw_bin = bw_adjs != 0
    has_edges = jnp.logical_and(jnp.any(fw_bin, axis=(1, 2)),
                                jnp.any(bw_bin, axis=(1, 2))).astype(jnp.int32)   # [V]
    return fw_bin.astype(jnp.int8), bw_bin.astype(jnp.int8), has_edges


def prepare_bignn_params(w_fw, b_fw, w_bw, b_bw, w_lin, b_lin):
    """One-time parameter packing: fuse per-view / per-direction GNN weights
    into a single [H, V*H] matrix (per view: [W_bw_i | W_fw_i])."""
    V, H, H2 = w_fw.shape
    w_pair = jnp.concatenate([w_bw, w_fw], axis=2)                    # [V, H, H]
    w_all = jnp.transpose(w_pair, (1, 0, 2)).reshape(H, V * H)        # [H, V*H] f32
    return dict(
        w_all=w_all.astype(jnp.float32),
        b_bw=b_bw.astype(jnp.float32),
        b_fw=b_fw.astype(jnp.float32),
        w_lin=w_lin.astype(jnp.bfloat16),
        b_lin=b_lin.astype(jnp.float32).reshape(1, H),
    )


def _pick_tile_n(N, V, H, vmem_budget_bytes):
    """Largest row tile whose streamed (double-buffered) + resident VMEM fits
    the budget.  TILE_N must divide N and be a multiple of 8 (or equal N)."""
    H2 = H // 2
    resident = (N * V * H * 2        # XW (bf16), resident across row tiles
                + H * H * 2          # W_lin (bf16)
                + 2 * V * H2 * 4     # biases (f32)
                + H * 4)             # linear bias (f32)
    cands = sorted({t for t in (8, 16, 32, 64, 128, 256, 512, 1024)
                    if t <= N and N % t == 0} | {N}, reverse=True)
    for t in cands:
        streamed = (2 * 2 * V * t * N      # fw + bw int8 adjacency, double-buffered
                    + 2 * 2 * t * H * 4    # x tile in + out tile, double-buffered (f32)
                    + t * H * 4)           # f32 accumulator scratch
        if resident + streamed <= vmem_budget_bytes:
            return t
    return cands[-1]


def bignn_forward(x, fw_adj_i8, bw_adj_i8, has_edges, params):
    N, H = x.shape
    V = fw_adj_i8.shape[0]
    H2 = H // 2

    x = x.astype(jnp.float32)

    # X @ W for all views and both directions in ONE matmul, hoisted out of the
    # row-tile loop (tiny vs the adjacency contraction); bf16 MXU operand.
    xw_all = jnp.dot(x, params["w_all"]).astype(jnp.bfloat16)          # [N, V*H]

    # Per-generation VMEM sizing (v7x has 64 MiB vs 128 MiB on v5e/v6e).
    try:
        vmem_cap = int(pltpu.get_tpu_info().vmem_capacity_bytes)
    except Exception:
        vmem_cap = 64 * 1024 * 1024
    vmem_limit = min((vmem_cap * 3) // 4, 100 * 1024 * 1024)
    tile_n = _pick_tile_n(N, V, H, vmem_limit // 2)
    grid = (N // tile_n,)

    return pl.pallas_call(
        bignn_kernel,
        out_shape=jax.ShapeDtypeStruct((N, H), jnp.float32),
        grid_spec=pltpu.PrefetchScalarGridSpec(
            num_scalar_prefetch=1,                      # has_edges -> SMEM
            grid=grid,                                  # row tiles over N
            in_specs=[
                pl.BlockSpec((tile_n, H), lambda i, he: (i, 0)),        # x row tile (f32)
                pl.BlockSpec((V, tile_n, N), lambda i, he: (0, i, 0)),  # fw adjacency (int8)
                pl.BlockSpec((V, tile_n, N), lambda i, he: (0, i, 0)),  # bw adjacency (int8)
                pl.BlockSpec((N, V * H), lambda i, he: (0, 0)),         # XW (bf16), resident
                pl.BlockSpec((V, H2), lambda i, he: (0, 0)),            # b_bw (f32)
                pl.BlockSpec((V, H2), lambda i, he: (0, 0)),            # b_fw (f32)
                pl.BlockSpec((H, H), lambda i, he: (0, 0)),             # W_lin (bf16)
                pl.BlockSpec((1, H), lambda i, he: (0, 0)),             # b_lin (f32)
            ],
            out_specs=pl.BlockSpec((tile_n, H), lambda i, he: (i, 0)),
            scratch_shapes=[pltpu.VMEM((tile_n, H), jnp.float32)],      # f32 running sum
        ),
        compiler_params=pltpu.CompilerParams(
            dimension_semantics=("parallel",),          # independent row tiles (2 TCs on v7x)
            vmem_limit_bytes=vmem_limit,
        ),
    )(has_edges, x, fw_adj_i8, bw_adj_i8, xw_all,
      params["b_bw"], params["b_fw"], params["w_lin"], params["b_lin"])


def bignn_reference(x, fw_adjs, bw_adjs, w_fw, b_fw, w_bw, b_bw, w_lin, b_lin):
    """Pure-JAX f32 reference (matches the PyTorch forward in eval mode)."""
    V = fw_adjs.shape[0]
    outs = []
    for i in range(V):
        fw_bin = (fw_adjs[i] != 0).astype(jnp.float32)
        bw_bin = (bw_adjs[i] != 0).astype(jnp.float32)
        if (not bool(jnp.any(fw_adjs[i] != 0))) or (not bool(jnp.any(bw_adjs[i] != 0))):
            outs.append(x)
        else:
            fw_o = jax.nn.relu(fw_bin @ x @ w_fw[i] + b_fw[i])
            bw_o = jax.nn.relu(bw_bin @ x @ w_bw[i] + b_bw[i])
            outs.append(jnp.concatenate([bw_o, fw_o], axis=-1))
    summed = jnp.sum(jnp.stack(outs, 0), axis=0)
    return jax.nn.relu(summed) @ w_lin + b_lin.reshape(1, -1) + x


if __name__ == "__main__":
    N, H, V = 8, 32, 3      # 8 spans, span_emb_size=32, 3 relation-type views
    H2 = H // 2

    key = jax.random.PRNGKey(0)
    ks = jax.random.split(key, 8)

    x = jax.random.normal(ks[0], (N, H), dtype=jnp.float32)

    # sparse-ish adjacencies; view 2's forward adjacency is empty to exercise
    # the "no edges -> passthrough" branch (and the pl.when skip path).
    fw_adjs = (jax.random.uniform(ks[1], (V, N, N)) > 0.7).astype(jnp.float32)
    bw_adjs = (jax.random.uniform(ks[2], (V, N, N)) > 0.7).astype(jnp.float32)
    fw_adjs = fw_adjs.at[2].set(jnp.zeros((N, N), jnp.float32))

    w_fw = 0.1 * jax.random.normal(ks[3], (V, H, H2), dtype=jnp.float32)
    b_fw = 0.1 * jax.random.normal(ks[4], (V, H2), dtype=jnp.float32)
    w_bw = 0.1 * jax.random.normal(ks[5], (V, H, H2), dtype=jnp.float32)
    b_bw = 0.1 * jax.random.normal(ks[6], (V, H2), dtype=jnp.float32)
    w_lin = 0.1 * jax.random.normal(ks[7], (H, H), dtype=jnp.float32)
    b_lin = jnp.zeros((H,), dtype=jnp.float32)

    # One-time prep (graph + params), then the per-call forward.
    fw_i8, bw_i8, has_edges = prepare_bignn_graph(fw_adjs, bw_adjs)
    params = prepare_bignn_params(w_fw, b_fw, w_bw, b_bw, w_lin, b_lin)

    out = bignn_forward(x, fw_i8, bw_i8, has_edges, params)
    out = jax.block_until_ready(out)

    ref = bignn_reference(x, fw_adjs, bw_adjs, w_fw, b_fw, w_bw, b_bw, w_lin, b_lin)
    # Tolerance loosened vs pure-f32: MXU operands (XW, adjacency, act) are bf16
    # with f32 accumulation, per the performance review.
    np.testing.assert_allclose(np.asarray(out), np.asarray(ref), rtol=5e-2, atol=5e-2)

    print("KERNEL_OK")
</pallas_src>

<mosaic_0001>
module attributes {stable_mosaic.version = 11 : i64} {
  func.func @bignn_kernel(%arg0: i32, %arg1: memref<3xi32, #tpu.memory_space<smem>>, %arg2: memref<8x32xf32, #tpu.memory_space<vmem>>, %arg3: memref<3x8x8xi8, #tpu.memory_space<vmem>>, %arg4: memref<3x8x8xi8, #tpu.memory_space<vmem>>, %arg5: memref<8x96xbf16, #tpu.memory_space<vmem>>, %arg6: memref<3x16xf32, #tpu.memory_space<vmem>>, %arg7: memref<3x16xf32, #tpu.memory_space<vmem>>, %arg8: memref<32x32xbf16, #tpu.memory_space<vmem>>, %arg9: memref<1x32xf32, #tpu.memory_space<vmem>>, %arg10: memref<8x32xf32, #tpu.memory_space<vmem>>, %arg11: memref<8x32xf32, #tpu.memory_space<vmem>>) attributes {dimension_semantics = [#tpu.dimension_semantics<parallel>], iteration_bounds = array<i64: 1>, scalar_prefetch = 1 : i64, scratch_operands = 1 : i64, tpu.core_type = #tpu.core_type<tc>, window_params = [{transform_indices = @transform_0, window_bounds = array<i64: 8, 32>}, {transform_indices = @transform_1, window_bounds = array<i64: 3, 8, 8>}, {transform_indices = @transform_2, window_bounds = array<i64: 3, 8, 8>}, {pipeline_mode = #tpu.pipeline_mode<synchronous>, transform_indices = @transform_3, window_bounds = array<i64: 8, 96>}, {pipeline_mode = #tpu.pipeline_mode<synchronous>, transform_indices = @transform_4, window_bounds = array<i64: 3, 16>}, {pipeline_mode = #tpu.pipeline_mode<synchronous>, transform_indices = @transform_5, window_bounds = array<i64: 3, 16>}, {pipeline_mode = #tpu.pipeline_mode<synchronous>, transform_indices = @transform_6, window_bounds = array<i64: 32, 32>}, {pipeline_mode = #tpu.pipeline_mode<synchronous>, transform_indices = @transform_7, window_bounds = array<i64: 1, 32>}, {transform_indices = @transform_8, window_bounds = array<i64: 8, 32>}]} {
    %c0 = arith.constant 0 : index
    %c0_0 = arith.constant 0 : index
    %0 = vector.load %arg2[%c0, %c0_0] : memref<8x32xf32, #tpu.memory_space<vmem>>, vector<8x32xf32>
    %cst = arith.constant 0.000000e+00 : f32
    %1 = vector.broadcast %cst : f32 to vector<8x32xf32>
    %c0_1 = arith.constant 0 : index
    %c0_2 = arith.constant 0 : index
    %2 = vector.load %arg11[%c0_1, %c0_2] : memref<8x32xf32, #tpu.memory_space<vmem>>, vector<8x32xf32>
    tpu.vector_store %arg11[%c0_1, %c0_2], %1 {strides = array<i32>} : memref<8x32xf32, #tpu.memory_space<vmem>>, vector<8x32xf32>,
    %c0_3 = arith.constant 0 : index
    %3 = memref.load %arg1[%c0_3] : memref<3xi32, #tpu.memory_space<smem>>
    %c0_i32 = arith.constant 0 : i32
    %4 = arith.cmpi ne, %3, %c0_i32 : i32
    %5 = arith.extui %4 : i1 to i32
    %c0_i32_4 = arith.constant 0 : i32
    %6 = arith.cmpi ne, %5, %c0_i32_4 : i32
    scf.if %6 {
      %c0_28 = arith.constant 0 : index
      %c0_29 = arith.constant 0 : index
      %c0_30 = arith.constant 0 : index
      %38 = vector.load %arg4[%c0_28, %c0_29, %c0_30] : memref<3x8x8xi8, #tpu.memory_space<vmem>>, vector<1x8x8xi8>
      %39 = vector.shape_cast %38 : vector<1x8x8xi8> to vector<8x8xi8>
      %40 = arith.sitofp %39 : vector<8x8xi8> to vector<8x8xf32>
      %41 = arith.truncf %40 : vector<8x8xf32> to vector<8x8xbf16>
      %c0_31 = arith.constant 0 : index
      %c0_32 = arith.constant 0 : index
      %c0_33 = arith.constant 0 : index
      %42 = vector.load %arg3[%c0_31, %c0_32, %c0_33] : memref<3x8x8xi8, #tpu.memory_space<vmem>>, vector<1x8x8xi8>
      %43 = vector.shape_cast %42 : vector<1x8x8xi8> to vector<8x8xi8>
      %44 = arith.sitofp %43 : vector<8x8xi8> to vector<8x8xf32>
      %45 = arith.truncf %44 : vector<8x8xf32> to vector<8x8xbf16>
      %c0_34 = arith.constant 0 : index
      %c0_35 = arith.constant 0 : index
      %46 = vector.load %arg5[%c0_34, %c0_35] : memref<8x96xbf16, #tpu.memory_space<vmem>>, vector<8x16xbf16>
      %c0_36 = arith.constant 0 : index
      %c16 = arith.constant 16 : index
      %47 = vector.load %arg5[%c0_36, %c16] : memref<8x96xbf16, #tpu.memory_space<vmem>>, vector<8x16xbf16>
      %cst_37 = arith.constant dense<0.000000e+00> : vector<8x16xf32>
      %48 = tpu.matmul %41, %46, %cst_37 {dimension_numbers = #tpu.dot_dimension_numbers<[1], [0], [0], [1], [0, 0, 1, 1], [], []>} : vector<8x8xbf16>, vector<8x16xbf16>, vector<8x16xf32> -> vector<8x16xf32>
      %cst_38 = arith.constant dense<0.000000e+00> : vector<8x16xf32>
      %49 = tpu.matmul %45, %47, %cst_38 {dimension_numbers = #tpu.dot_dimension_numbers<[1], [0], [0], [1], [0, 0, 1, 1], [], []>} : vector<8x8xbf16>, vector<8x16xbf16>, vector<8x16xf32> -> vector<8x16xf32>
      %c0_39 = arith.constant 0 : index
      %c0_40 = arith.constant 0 : index
      %50 = vector.load %arg11[%c0_39, %c0_40] : memref<8x32xf32, #tpu.memory_space<vmem>>, vector<8x16xf32>
      %c0_41 = arith.constant 0 : index
      %c0_42 = arith.constant 0 : index
      %51 = vector.load %arg6[%c0_41, %c0_42] : memref<3x16xf32, #tpu.memory_space<vmem>>, vector<1x16xf32>
      %52 = vector.shape_cast %51 : vector<1x16xf32> to vector<16xf32>
      %53 = vector.shape_cast %52 : vector<16xf32> to vector<1x16xf32>
      %54 = vector.broadcast %53 : vector<1x16xf32> to vector<8x16xf32>
      %55 = arith.addf %48, %54 : vector<8x16xf32>
      %cst_43 = arith.constant 0.000000e+00 : f32
      %56 = vector.broadcast %cst_43 : f32 to vector<8x16xf32>
      %57 = arith.maximumf %55, %56 : vector<8x16xf32>
      %58 = arith.addf %50, %57 : vector<8x16xf32>
      %c0_44 = arith.constant 0 : index
      %c0_45 = arith.constant 0 : index
      %59 = vector.load %arg11[%c0_44, %c0_45] : memref<8x32xf32, #tpu.memory_space<vmem>>, vector<8x16xf32>
      tpu.vector_store %arg11[%c0_44, %c0_45], %58 {strides = array<i32>} : memref<8x32xf32, #tpu.memory_space<vmem>>, vector<8x16xf32>,
      %c0_46 = arith.constant 0 : index
      %c16_47 = arith.constant 16 : index
      %60 = vector.load %arg11[%c0_46, %c16_47] : memref<8x32xf32, #tpu.memory_space<vmem>>, vector<8x16xf32>
      %c0_48 = arith.constant 0 : index
      %c0_49 = arith.constant 0 : index
      %61 = vector.load %arg7[%c0_48, %c0_49] : memref<3x16xf32, #tpu.memory_space<vmem>>, vector<1x16xf32>
      %62 = vector.shape_cast %61 : vector<1x16xf32> to vector<16xf32>
      %63 = vector.shape_cast %62 : vector<16xf32> to vector<1x16xf32>
      %64 = vector.broadcast %63 : vector<1x16xf32> to vector<8x16xf32>
      %65 = arith.addf %49, %64 : vector<8x16xf32>
      %cst_50 = arith.constant 0.000000e+00 : f32
      %66 = vector.broadcast %cst_50 : f32 to vector<8x16xf32>
      %67 = arith.maximumf %65, %66 : vector<8x16xf32>
      %68 = arith.addf %60, %67 : vector<8x16xf32>
      %c0_51 = arith.constant 0 : index
      %c16_52 = arith.constant 16 : index
      %69 = vector.load %arg11[%c0_51, %c16_52] : memref<8x32xf32, #tpu.memory_space<vmem>>, vector<8x16xf32>
      tpu.vector_store %arg11[%c0_51, %c16_52], %68 {strides = array<i32>} : memref<8x32xf32, #tpu.memory_space<vmem>>, vector<8x16xf32>,
    } else {
    }
    %c0_5 = arith.constant 0 : index
    %7 = memref.load %arg1[%c0_5] : memref<3xi32, #tpu.memory_space<smem>>
    %c0_i32_6 = arith.constant 0 : i32
    %8 = arith.cmpi eq, %7, %c0_i32_6 : i32
    %9 = arith.extui %8 : i1 to i32
    %c0_i32_7 = arith.constant 0 : i32
    %10 = arith.cmpi ne, %9, %c0_i32_7 : i32
    scf.if %10 {
      %c0_28 = arith.constant 0 : index
      %c0_29 = arith.constant 0 : index
      %38 = vector.load %arg11[%c0_28, %c0_29] : memref<8x32xf32, #tpu.memory_space<vmem>>, vector<8x32xf32>
      %39 = arith.addf %38, %0 : vector<8x32xf32>
      %c0_30 = arith.constant 0 : index
      %c0_31 = arith.constant 0 : index
      %40 = vector.load %arg11[%c0_30, %c0_31] : memref<8x32xf32, #tpu.memory_space<vmem>>, vector<8x32xf32>
      tpu.vector_store %arg11[%c0_30, %c0_31], %39 {strides = array<i32>} : memref<8x32xf32, #tpu.memory_space<vmem>>, vector<8x32xf32>,
    } else {
    }
    %c1 = arith.constant 1 : index
    %11 = memref.load %arg1[%c1] : memref<3xi32, #tpu.memory_space<smem>>
    %c0_i32_8 = arith.constant 0 : i32
    %12 = arith.cmpi ne, %11, %c0_i32_8 : i32
    %13 = arith.extui %12 : i1 to i32
    %c0_i32_9 = arith.constant 0 : i32
    %14 = arith.cmpi ne, %13, %c0_i32_9 : i32
    scf.if %14 {
      %c1_28 = arith.constant 1 : index
      %c0_29 = arith.constant 0 : index
      %c0_30 = arith.constant 0 : index
      %38 = vector.load %arg4[%c1_28, %c0_29, %c0_30] : memref<3x8x8xi8, #tpu.memory_space<vmem>>, vector<1x8x8xi8>
      %39 = vector.shape_cast %38 : vector<1x8x8xi8> to vector<8x8xi8>
      %40 = arith.sitofp %39 : vector<8x8xi8> to vector<8x8xf32>
      %41 = arith.truncf %40 : vector<8x8xf32> to vector<8x8xbf16>
      %c1_31 = arith.constant 1 : index
      %c0_32 = arith.constant 0 : index
      %c0_33 = arith.constant 0 : index
      %42 = vector.load %arg3[%c1_31, %c0_32, %c0_33] : memref<3x8x8xi8, #tpu.memory_space<vmem>>, vector<1x8x8xi8>
      %43 = vector.shape_cast %42 : vector<1x8x8xi8> to vector<8x8xi8>
      %44 = arith.sitofp %43 : vector<8x8xi8> to vector<8x8xf32>
      %45 = arith.truncf %44 : vector<8x8xf32> to vector<8x8xbf16>
      %c0_34 = arith.constant 0 : index
      %c32 = arith.constant 32 : index
      %46 = vector.load %arg5[%c0_34, %c32] : memref<8x96xbf16, #tpu.memory_space<vmem>>, vector<8x16xbf16>
      %c0_35 = arith.constant 0 : index
      %c48 = arith.constant 48 : index
      %47 = vector.load %arg5[%c0_35, %c48] : memref<8x96xbf16, #tpu.memory_space<vmem>>, vector<8x16xbf16>
      %cst_36 = arith.constant dense<0.000000e+00> : vector<8x16xf32>
      %48 = tpu.matmul %41, %46, %cst_36 {dimension_numbers = #tpu.dot_dimension_numbers<[1], [0], [0], [1], [0, 0, 1, 1], [], []>} : vector<8x8xbf16>, vector<8x16xbf16>, vector<8x16xf32> -> vector<8x16xf32>
      %cst_37 = arith.constant dense<0.000000e+00> : vector<8x16xf32>
      %49 = tpu.matmul %45, %47, %cst_37 {dimension_numbers = #tpu.dot_dimension_numbers<[1], [0], [0], [1], [0, 0, 1, 1], [], []>} : vector<8x8xbf16>, vector<8x16xbf16>, vector<8x16xf32> -> vector<8x16xf32>
      %c0_38 = arith.constant 0 : index
      %c0_39 = arith.constant 0 : index
      %50 = vector.load %arg11[%c0_38, %c0_39] : memref<8x32xf32, #tpu.memory_space<vmem>>, vector<8x16xf32>
      %c1_40 = arith.constant 1 : index
      %c0_41 = arith.constant 0 : index
      %51 = vector.load %arg6[%c1_40, %c0_41] : memref<3x16xf32, #tpu.memory_space<vmem>>, vector<1x16xf32>
      %52 = vector.shape_cast %51 : vector<1x16xf32> to vector<16xf32>
      %53 = vector.shape_cast %52 : vector<16xf32> to vector<1x16xf32>
      %54 = vector.broadcast %53 : vector<1x16xf32> to vector<8x16xf32>
      %55 = arith.addf %48, %54 : vector<8x16xf32>
      %cst_42 = arith.constant 0.000000e+00 : f32
      %56 = vector.broadcast %cst_42 : f32 to vector<8x16xf32>
      %57 = arith.maximumf %55, %56 : vector<8x16xf32>
      %58 = arith.addf %50, %57 : vector<8x16xf32>
      %c0_43 = arith.constant 0 : index
      %c0_44 = arith.constant 0 : index
      %59 = vector.load %arg11[%c0_43, %c0_44] : memref<8x32xf32, #tpu.memory_space<vmem>>, vector<8x16xf32>
      tpu.vector_store %arg11[%c0_43, %c0_44], %58 {strides = array<i32>} : memref<8x32xf32, #tpu.memory_space<vmem>>, vector<8x16xf32>,
      %c0_45 = arith.constant 0 : index
      %c16 = arith.constant 16 : index
      %60 = vector.load %arg11[%c0_45, %c16] : memref<8x32xf32, #tpu.memory_space<vmem>>, vector<8x16xf32>
      %c1_46 = arith.constant 1 : index
      %c0_47 = arith.constant 0 : index
      %61 = vector.load %arg7[%c1_46, %c0_47] : memref<3x16xf32, #tpu.memory_space<vmem>>, vector<1x16xf32>
      %62 = vector.shape_cast %61 : vector<1x16xf32> to vector<16xf32>
      %63 = vector.shape_cast %62 : vector<16xf32> to vector<1x16xf32>
      %64 = vector.broadcast %63 : vector<1x16xf32> to vector<8x16xf32>
      %65 = arith.addf %49, %64 : vector<8x16xf32>
      %cst_48 = arith.constant 0.000000e+00 : f32
      %66 = vector.broadcast %cst_48 : f32 to vector<8x16xf32>
      %67 = arith.maximumf %65, %66 : vector<8x16xf32>
      %68 = arith.addf %60, %67 : vector<8x16xf32>
      %c0_49 = arith.constant 0 : index
      %c16_50 = arith.constant 16 : index
      %69 = vector.load %arg11[%c0_49, %c16_50] : memref<8x32xf32, #tpu.memory_space<vmem>>, vector<8x16xf32>
      tpu.vector_store %arg11[%c0_49, %c16_50], %68 {strides = array<i32>} : memref<8x32xf32, #tpu.memory_space<vmem>>, vector<8x16xf32>,
    } else {
    }
    %c1_10 = arith.constant 1 : index
    %15 = memref.load %arg1[%c1_10] : memref<3xi32, #tpu.memory_space<smem>>
    %c0_i32_11 = arith.constant 0 : i32
    %16 = arith.cmpi eq, %15, %c0_i32_11 : i32
    %17 = arith.extui %16 : i1 to i32
    %c0_i32_12 = arith.constant 0 : i32
    %18 = arith.cmpi ne, %17, %c0_i32_12 : i32
    scf.if %18 {
      %c0_28 = arith.constant 0 : index
      %c0_29 = arith.constant 0 : index
      %38 = vector.load %arg11[%c0_28, %c0_29] : memref<8x32xf32, #tpu.memory_space<vmem>>, vector<8x32xf32>
      %39 = arith.addf %38, %0 : vector<8x32xf32>
      %c0_30 = arith.constant 0 : index
      %c0_31 = arith.constant 0 : index
      %40 = vector.load %arg11[%c0_30, %c0_31] : memref<8x32xf32, #tpu.memory_space<vmem>>, vector<8x32xf32>
      tpu.vector_store %arg11[%c0_30, %c0_31], %39 {strides = array<i32>} : memref<8x32xf32, #tpu.memory_space<vmem>>, vector<8x32xf32>,
    } else {
    }
    %c2 = arith.constant 2 : index
    %19 = memref.load %arg1[%c2] : memref<3xi32, #tpu.memory_space<smem>>
    %c0_i32_13 = arith.constant 0 : i32
    %20 = arith.cmpi ne, %19, %c0_i32_13 : i32
    %21 = arith.extui %20 : i1 to i32
    %c0_i32_14 = arith.constant 0 : i32
    %22 = arith.cmpi ne, %21, %c0_i32_14 : i32
    scf.if %22 {
      %c2_28 = arith.constant 2 : index
      %c0_29 = arith.constant 0 : index
      %c0_30 = arith.constant 0 : index
      %38 = vector.load %arg4[%c2_28, %c0_29, %c0_30] : memref<3x8x8xi8, #tpu.memory_space<vmem>>, vector<1x8x8xi8>
      %39 = vector.shape_cast %38 : vector<1x8x8xi8> to vector<8x8xi8>
      %40 = arith.sitofp %39 : vector<8x8xi8> to vector<8x8xf32>
      %41 = arith.truncf %40 : vector<8x8xf32> to vector<8x8xbf16>
      %c2_31 = arith.constant 2 : index
      %c0_32 = arith.constant 0 : index
      %c0_33 = arith.constant 0 : index
      %42 = vector.load %arg3[%c2_31, %c0_32, %c0_33] : memref<3x8x8xi8, #tpu.memory_space<vmem>>, vector<1x8x8xi8>
      %43 = vector.shape_cast %42 : vector<1x8x8xi8> to vector<8x8xi8>
      %44 = arith.sitofp %43 : vector<8x8xi8> to vector<8x8xf32>
      %45 = arith.truncf %44 : vector<8x8xf32> to vector<8x8xbf16>
      %c0_34 = arith.constant 0 : index
      %c64 = arith.constant 64 : index
      %46 = vector.load %arg5[%c0_34, %c64] : memref<8x96xbf16, #tpu.memory_space<vmem>>, vector<8x16xbf16>
      %c0_35 = arith.constant 0 : index
      %c80 = arith.constant 80 : index
      %47 = vector.load %arg5[%c0_35, %c80] : memref<8x96xbf16, #tpu.memory_space<vmem>>, vector<8x16xbf16>
      %cst_36 = arith.constant dense<0.000000e+00> : vector<8x16xf32>
      %48 = tpu.matmul %41, %46, %cst_36 {dimension_numbers = #tpu.dot_dimension_numbers<[1], [0], [0], [1], [0, 0, 1, 1], [], []>} : vector<8x8xbf16>, vector<8x16xbf16>, vector<8x16xf32> -> vector<8x16xf32>
      %cst_37 = arith.constant dense<0.000000e+00> : vector<8x16xf32>
      %49 = tpu.matmul %45, %47, %cst_37 {dimension_numbers = #tpu.dot_dimension_numbers<[1], [0], [0], [1], [0, 0, 1, 1], [], []>} : vector<8x8xbf16>, vector<8x16xbf16>, vector<8x16xf32> -> vector<8x16xf32>
      %c0_38 = arith.constant 0 : index
      %c0_39 = arith.constant 0 : index
      %50 = vector.load %arg11[%c0_38, %c0_39] : memref<8x32xf32, #tpu.memory_space<vmem>>, vector<8x16xf32>
      %c2_40 = arith.constant 2 : index
      %c0_41 = arith.constant 0 : index
      %51 = vector.load %arg6[%c2_40, %c0_41] : memref<3x16xf32, #tpu.memory_space<vmem>>, vector<1x16xf32>
      %52 = vector.shape_cast %51 : vector<1x16xf32> to vector<16xf32>
      %53 = vector.shape_cast %52 : vector<16xf32> to vector<1x16xf32>
      %54 = vector.broadcast %53 : vector<1x16xf32> to vector<8x16xf32>
      %55 = arith.addf %48, %54 : vector<8x16xf32>
      %cst_42 = arith.constant 0.000000e+00 : f32
      %56 = vector.broadcast %cst_42 : f32 to vector<8x16xf32>
      %57 = arith.maximumf %55, %56 : vector<8x16xf32>
      %58 = arith.addf %50, %57 : vector<8x16xf32>
      %c0_43 = arith.constant 0 : index
      %c0_44 = arith.constant 0 : index
      %59 = vector.load %arg11[%c0_43, %c0_44] : memref<8x32xf32, #tpu.memory_space<vmem>>, vector<8x16xf32>
      tpu.vector_store %arg11[%c0_43, %c0_44], %58 {strides = array<i32>} : memref<8x32xf32, #tpu.memory_space<vmem>>, vector<8x16xf32>,
      %c0_45 = arith.constant 0 : index
      %c16 = arith.constant 16 : index
      %60 = vector.load %arg11[%c0_45, %c16] : memref<8x32xf32, #tpu.memory_space<vmem>>, vector<8x16xf32>
      %c2_46 = arith.constant 2 : index
      %c0_47 = arith.constant 0 : index
      %61 = vector.load %arg7[%c2_46, %c0_47] : memref<3x16xf32, #tpu.memory_space<vmem>>, vector<1x16xf32>
      %62 = vector.shape_cast %61 : vector<1x16xf32> to vector<16xf32>
      %63 = vector.shape_cast %62 : vector<16xf32> to vector<1x16xf32>
      %64 = vector.broadcast %63 : vector<1x16xf32> to vector<8x16xf32>
      %65 = arith.addf %49, %64 : vector<8x16xf32>
      %cst_48 = arith.constant 0.000000e+00 : f32
      %66 = vector.broadcast %cst_48 : f32 to vector<8x16xf32>
      %67 = arith.maximumf %65, %66 : vector<8x16xf32>
      %68 = arith.addf %60, %67 : vector<8x16xf32>
      %c0_49 = arith.constant 0 : index
      %c16_50 = arith.constant 16 : index
      %69 = vector.load %arg11[%c0_49, %c16_50] : memref<8x32xf32, #tpu.memory_space<vmem>>, vector<8x16xf32>
      tpu.vector_store %arg11[%c0_49, %c16_50], %68 {strides = array<i32>} : memref<8x32xf32, #tpu.memory_space<vmem>>, vector<8x16xf32>,
    } else {
    }
    %c2_15 = arith.constant 2 : index
    %23 = memref.load %arg1[%c2_15] : memref<3xi32, #tpu.memory_space<smem>>
    %c0_i32_16 = arith.constant 0 : i32
    %24 = arith.cmpi eq, %23, %c0_i32_16 : i32
    %25 = arith.extui %24 : i1 to i32
    %c0_i32_17 = arith.constant 0 : i32
    %26 = arith.cmpi ne, %25, %c0_i32_17 : i32
    scf.if %26 {
      %c0_28 = arith.constant 0 : index
      %c0_29 = arith.constant 0 : index
      %38 = vector.load %arg11[%c0_28, %c0_29] : memref<8x32xf32, #tpu.memory_space<vmem>>, vector<8x32xf32>
      %39 = arith.addf %38, %0 : vector<8x32xf32>
      %c0_30 = arith.constant 0 : index
      %c0_31 = arith.constant 0 : index
      %40 = vector.load %arg11[%c0_30, %c0_31] : memref<8x32xf32, #tpu.memory_space<vmem>>, vector<8x32xf32>
      tpu.vector_store %arg11[%c0_30, %c0_31], %39 {strides = array<i32>} : memref<8x32xf32, #tpu.memory_space<vmem>>, vector<8x32xf32>,
    } else {
    }
    %c0_18 = arith.constant 0 : index
    %c0_19 = arith.constant 0 : index
    %27 = vector.load %arg11[%c0_18, %c0_19] : memref<8x32xf32, #tpu.memory_space<vmem>>, vector<8x32xf32>
    %cst_20 = arith.constant 0.000000e+00 : f32
    %28 = vector.broadcast %cst_20 : f32 to vector<8x32xf32>
    %29 = arith.maximumf %27, %28 : vector<8x32xf32>
    %30 = arith.truncf %29 : vector<8x32xf32> to vector<8x32xbf16>
    %c0_21 = arith.constant 0 : index
    %c0_22 = arith.constant 0 : index
    %31 = vector.load %arg8[%c0_21, %c0_22] : memref<32x32xbf16, #tpu.memory_space<vmem>>, vector<32x32xbf16>
    %cst_23 = arith.constant dense<0.000000e+00> : vector<8x32xf32>
    %32 = tpu.matmul %30, %31, %cst_23 {dimension_numbers = #tpu.dot_dimension_numbers<[1], [0], [0], [1], [0, 0, 1, 1], [], []>} : vector<8x32xbf16>, vector<32x32xbf16>, vector<8x32xf32> -> vector<8x32xf32>
    %c0_24 = arith.constant 0 : index
    %c0_25 = arith.constant 0 : index
    %33 = vector.load %arg9[%c0_24, %c0_25] : memref<1x32xf32, #tpu.memory_space<vmem>>, vector<1x32xf32>
    %34 = vector.broadcast %33 : vector<1x32xf32> to vector<8x32xf32>
    %35 = arith.addf %32, %34 : vector<8x32xf32>
    %36 = arith.addf %35, %0 : vector<8x32xf32>
    %c0_26 = arith.constant 0 : index
    %c0_27 = arith.constant 0 : index
    %37 = vector.load %arg10[%c0_26, %c0_27] : memref<8x32xf32, #tpu.memory_space<vmem>>, vector<8x32xf32>
    tpu.vector_store %arg10[%c0_26, %c0_27], %36 {strides = array<i32>} : memref<8x32xf32, #tpu.memory_space<vmem>>, vector<8x32xf32>,
    return
  }
  func.func @transform_0(%arg0: i32, %arg1: memref<3xi32, #tpu.memory_space<smem>>) -> (i32, i32) {
    %c0_i32 = arith.constant 0 : i32
    %c0_i32_0 = arith.constant 0 : i32
    return %arg0, %c0_i32 : i32, i32
  }
  func.func @transform_1(%arg0: i32, %arg1: memref<3xi32, #tpu.memory_space<smem>>) -> (i32, i32, i32) {
    %c0_i32 = arith.constant 0 : i32
    %c0_i32_0 = arith.constant 0 : i32
    %c0_i32_1 = arith.constant 0 : i32
    return %c0_i32, %arg0, %c0_i32_0 : i32, i32, i32
  }
  func.func @transform_2(%arg0: i32, %arg1: memref<3xi32, #tpu.memory_space<smem>>) -> (i32, i32, i32) {
    %c0_i32 = arith.constant 0 : i32
    %c0_i32_0 = arith.constant 0 : i32
    %c0_i32_1 = arith.constant 0 : i32
    return %c0_i32, %arg0, %c0_i32_0 : i32, i32, i32
  }
  func.func @transform_3(%arg0: i32, %arg1: memref<3xi32, #tpu.memory_space<smem>>) -> (i32, i32) {
    %c0_i32 = arith.constant 0 : i32
    %c0_i32_0 = arith.constant 0 : i32
    %c0_i32_1 = arith.constant 0 : i32
    return %c0_i32, %c0_i32_0 : i32, i32
  }
  func.func @transform_4(%arg0: i32, %arg1: memref<3xi32, #tpu.memory_space<smem>>) -> (i32, i32) {
    %c0_i32 = arith.constant 0 : i32
    %c0_i32_0 = arith.constant 0 : i32
    %c0_i32_1 = arith.constant 0 : i32
    return %c0_i32, %c0_i32_0 : i32, i32
  }
  func.func @transform_5(%arg0: i32, %arg1: memref<3xi32, #tpu.memory_space<smem>>) -> (i32, i32) {
    %c0_i32 = arith.constant 0 : i32
    %c0_i32_0 = arith.constant 0 : i32
    %c0_i32_1 = arith.constant 0 : i32
    return %c0_i32, %c0_i32_0 : i32, i32
  }
  func.func @transform_6(%arg0: i32, %arg1: memref<3xi32, #tpu.memory_space<smem>>) -> (i32, i32) {
    %c0_i32 = arith.constant 0 : i32
    %c0_i32_0 = arith.constant 0 : i32
    %c0_i32_1 = arith.constant 0 : i32
    return %c0_i32, %c0_i32_0 : i32, i32
  }
  func.func @transform_7(%arg0: i32, %arg1: memref<3xi32, #tpu.memory_space<smem>>) -> (i32, i32) {
    %c0_i32 = arith.constant 0 : i32
    %c0_i32_0 = arith.constant 0 : i32
    %c0_i32_1 = arith.constant 0 : i32
    return %c0_i32, %c0_i32_0 : i32, i32
  }
  func.func @transform_8(%arg0: i32, %arg1: memref<3xi32, #tpu.memory_space<smem>>) -> (i32, i32) {
    %c0_i32 = arith.constant 0 : i32
    %c0_i32_0 = arith.constant 0 : i32
    return %arg0, %c0_i32 : i32, i32
  }
}

</mosaic_0001>

<llo_original>
// kernel: tpu_custom_call.1
$region0: #{tpu_custom_call.1}
  #allocation0 [shape = 'u32[]', space=smem, size = 0x4, offset = 0x4, fixed_abs, tag = 'smem constant byte address 0x4 - core index']
  #allocation1 [shape = 'u32[144,128]{1,0:T(1,128)}', space=vmem, size = 0x12000, scoped, tag = 'internal scratch']
  #allocation2 [shape = 'f32[8,32]{1,0:T(8,128)}', space=vmem, size = 0x1000, scoped, tag = 'scratch operand']
  #allocation3 [shape = 's32[1]{0}', space=sflag, size = 0x4, scoped, tag = 'scoped memory for tpu_custom_call.1']
  #allocation4 [shape = 'u8[512]{0}', space=smem, size = 0x200, scoped, tag = 'prefetched SMEM operand 0']
  %s0 = inlined_call_operand.hbm [shape: s32[3], index: 0, kind: input, shape index: {}]
  %s1 = inlined_call_operand.hbm [shape: f32[8,32], index: 1, kind: input, shape index: {}]
  %s2 = inlined_call_operand.vmem [shape: s8[3,8,8], index: 2, kind: input, shape index: {}]
  %s3 = inlined_call_operand.hbm [shape: s8[3,8,8], index: 3, kind: input, shape index: {}]
  %s4 = inlined_call_operand.vmem [shape: bf16[8,96], index: 4, kind: input, shape index: {}]
  %s5 = inlined_call_operand.hbm [shape: f32[3,16], index: 5, kind: input, shape index: {}]
  %s6 = inlined_call_operand.hbm [shape: f32[3,16], index: 6, kind: input, shape index: {}]
  %s7 = inlined_call_operand.vmem [shape: bf16[32,32], index: 7, kind: input, shape index: {}]
  %s8 = inlined_call_operand.vmem [shape: f32[1,32], index: 8, kind: input, shape index: {}]
  %s9 = inlined_call_operand.hbm [shape: f32[8,32], index: 9, kind: output, shape index: {}]
  %s10 = sld [smem:[#allocation0]]
  $region82: #{tpu_custom_call.1} parent=0
    _
  %s12 = ssub.s32 1, %s10
  %s13 = scalar_select 0, %s12, %s10
  %15 = dma.hbm_to_smem %s0, 16, [#allocation4], [#allocation3]
  %16 = dma.done [#allocation3], 16
  %17 = sfence
  $region1: #{tpu_custom_call.1} parent=0
    #allocation5 [shape = 'u8[4096]{0}', space=vmem, size = 0x1000, scoped, tag = 'input window, operand 1, single buffered']
    #allocation6 [shape = 's32[1]{0}', space=sflag, size = 0x4, scoped, tag = 'scoped memory for tpu_custom_call.1']
    #allocation7 [shape = 's32[1]{0}', space=sflag, size = 0x4, scoped, tag = 'scoped memory for tpu_custom_call.1']
    #allocation8 [shape = 'u8[3072]{0}', space=vmem, size = 0xc00, scoped, tag = 'input window, operand 3, single buffered']
    #allocation9 [shape = 's32[1]{0}', space=sflag, size = 0x4, scoped, tag = 'scoped memory for tpu_custom_call.1']
    #allocation10 [shape = 'u8[2048]{0}', space=vmem, size = 0x800, scoped, tag = 'input window, operand 5, single buffered']
    #allocation11 [shape = 'u8[2048]{0}', space=vmem, size = 0x800, scoped, tag = 'input window, operand 6, single buffered']
    #allocation12 [shape = 's32[1]{0}', space=sflag, size = 0x4, scoped, tag = 'scoped memory for tpu_custom_call.1']
    #allocation13 [shape = 'u8[4096]{0}', space=vmem, size = 0x1000, scoped, tag = 'output window, operand 0, single buffered']
    %18 = vsyncpa [#allocation6], 0
    %19 = vsyncpa [#allocation9], 0
    %20 = vsyncpa [#allocation12], 0
    %21 = vsyncpa [#allocation7], 0
    // Predicated region
    $region2: #{tpu_custom_call.1} parent=1 // pred_check
      _
    $region3: #{tpu_custom_call.1} parent=1 // pred_check_branch
      %23 = sbr.rel (0) target = $region5
    $region4: #{tpu_custom_call.1} parent=1 // pred_region
      %s25 = ssub.s32 128, 128
      %26 = vsyncadd [#allocation6], %s25
      %s28 = sshll.u32 [#allocation5], 4
      %s29 = int_to_ptr.vmem [resolvable:$true] %s28
      %31 = dma.hbm_to_vmem [thread:$0]  %s1, 128, %s29, [#allocation6]
    $region5: #{tpu_custom_call.1} parent=1 // pred_fallthru
      _
    // Predicated region
    $region6: #{tpu_custom_call.1} parent=1 // pred_check
      _
    $region7: #{tpu_custom_call.1} parent=1 // pred_check_branch
      %33 = sbr.rel (0) target = $region9
    $region8: #{tpu_custom_call.1} parent=1 // pred_region
      _
    $region9: #{tpu_custom_call.1} parent=1 // pred_fallthru
      _
    // Predicated region
    $region10: #{tpu_custom_call.1} parent=1 // pred_check
      _
    $region11: #{tpu_custom_call.1} parent=1 // pred_check_branch
      %35 = sbr.rel (0) target = $region13
    $region12: #{tpu_custom_call.1} parent=1 // pred_region
      %s37 = ssub.s32 96, 96
      %38 = vsyncadd [#allocation9], %s37
      %s39 = sshll.u32 [#allocation8], 4
      %s40 = int_to_ptr.vmem [resolvable:$true] %s39
      %45 = dma.hbm_to_vmem [thread:$0]  %s3, 96, %s40, [#allocation9], 32, 32, 2
    $region13: #{tpu_custom_call.1} parent=1 // pred_fallthru
      _
    // Predicated region
    $region14: #{tpu_custom_call.1} parent=1 // pred_check
      _
    $region15: #{tpu_custom_call.1} parent=1 // pred_check_branch
      %47 = sbr.rel (0) target = $region17
    $region16: #{tpu_custom_call.1} parent=1 // pred_region
      _
    $region17: #{tpu_custom_call.1} parent=1 // pred_fallthru
      _
    // Predicated region
    $region18: #{tpu_custom_call.1} parent=1 // pred_check
      _
    $region19: #{tpu_custom_call.1} parent=1 // pred_check_branch
      %49 = sbr.rel (0) target = $region21
    $region20: #{tpu_custom_call.1} parent=1 // pred_region
      %s51 = ssub.s32 64, 64
      %52 = vsyncadd [#allocation9], %s51
      %s54 = sshll.u32 [#allocation10], 4
      %s55 = int_to_ptr.vmem [resolvable:$true] %s54
      %57 = dma.hbm_to_vmem [thread:$0]  %s5, 64, %s55, [#allocation9]
    $region21: #{tpu_custom_call.1} parent=1 // pred_fallthru
      _
    // Predicated region
    $region22: #{tpu_custom_call.1} parent=1 // pred_check
      _
    $region23: #{tpu_custom_call.1} parent=1 // pred_check_branch
      %59 = sbr.rel (0) target = $region25
    $region24: #{tpu_custom_call.1} parent=1 // pred_region
      %s61 = ssub.s32 64, 64
      %62 = vsyncadd [#allocation12], %s61
      %s64 = sshll.u32 [#allocation11], 4
      %s65 = int_to_ptr.vmem [resolvable:$true] %s64
      %67 = dma.hbm_to_vmem [thread:$0]  %s6, 64, %s65, [#allocation12]
    $region25: #{tpu_custom_call.1} parent=1 // pred_fallthru
      _
    // Predicated region
    $region26: #{tpu_custom_call.1} parent=1 // pred_check
      _
    $region27: #{tpu_custom_call.1} parent=1 // pred_check_branch
      %69 = sbr.rel (0) target = $region29
    $region28: #{tpu_custom_call.1} parent=1 // pred_region
      _
    $region29: #{tpu_custom_call.1} parent=1 // pred_fallthru
      _
    // Predicated region
    $region30: #{tpu_custom_call.1} parent=1 // pred_check
      _
    $region31: #{tpu_custom_call.1} parent=1 // pred_check_branch
      %71 = sbr.rel (0) target = $region33
    $region32: #{tpu_custom_call.1} parent=1 // pred_region
      _
    $region33: #{tpu_custom_call.1} parent=1 // pred_fallthru
      _
    // Predicated region
    $region34: #{tpu_custom_call.1} parent=1 // pred_check
      _
    $region35: #{tpu_custom_call.1} parent=1 // pred_check_branch
      %73 = sbr.rel (0) target = $region37
    $region36: #{tpu_custom_call.1} parent=1 // pred_region
      %74 = dma.done [#allocation6], 128
    $region37: #{tpu_custom_call.1} parent=1 // pred_fallthru
      _
    // Predicated region
    $region38: #{tpu_custom_call.1} parent=1 // pred_check
      _
    $region39: #{tpu_custom_call.1} parent=1 // pred_check_branch
      %76 = sbr.rel (0) target = $region41
    $region40: #{tpu_custom_call.1} parent=1 // pred_region
      %77 = dma.done [#allocation9], 96
    $region41: #{tpu_custom_call.1} parent=1 // pred_fallthru
      _
    // Predicated region
    $region42: #{tpu_custom_call.1} parent=1 // pred_check
      _
    $region43: #{tpu_custom_call.1} parent=1 // pred_check_branch
      %79 = sbr.rel (0) target = $region45
    $region44: #{tpu_custom_call.1} parent=1 // pred_region
      %80 = dma.done [#allocation9], 64
    $region45: #{tpu_custom_call.1} parent=1 // pred_fallthru
      _
    // Predicated region
    $region46: #{tpu_custom_call.1} parent=1 // pred_check
      _
    $region47: #{tpu_custom_call.1} parent=1 // pred_check_branch
      %82 = sbr.rel (0) target = $region49
    $region48: #{tpu_custom_call.1} parent=1 // pred_region
      %83 = dma.done [#allocation12], 64
    $region49: #{tpu_custom_call.1} parent=1 // pred_fallthru
      _
    %v85 = vld [vmem:[#allocation5] sm:$0xff]
    %vm86 = vcmask 261120
    %87 = vst.msk [vmem:[#allocation2] sm:$0xff] %vm86, 0.0
    %s88 = sld [smem:[#allocation4]]
    %p89 = scmp.ne.s32.totalorder %s88, 0
    // Predicated region
    $region50: #{tpu_custom_call.1} parent=1 // pred_check
      %p90 = pneg %p89
    $region51: #{tpu_custom_call.1} parent=1 // pred_check_branch
      %92 = sbr.rel (%p90) target = $region53
    $region52: #{tpu_custom_call.1} parent=1 // pred_region
      %v93 = vld [vmem:[#allocation8] sm:$0x3]
      %v94 = vunpack.c.l.s8.bf16 %v93
      %v95 = vld [vmem:[%s2] sm:$0x3]
      %v96 = vunpack.c.l.s8.bf16 %v95
      %v97 = vld [vmem:[%s4] sm:$0xf]
      %v98 = vld [vmem:[#allocation2] sm:$0xff]
      %v99 = vld [vmem:[#allocation10] sm:$0x1]
      %v100 = vlaneseq
      %v101 = vshrl.u32 %v100, 7
      %v102 = vsub.s32 0, %v101
      %v103 = vrot.slane %v99, %v102
      %vm104 = vcmask 64512
      %v106 = vsel %vm104, %v94, 0
      %vm108 = vcmask 1043456
      %v110 = vsel %vm108, %v97, 0
      %112 = vmatprep.subr.bf16.mxu0 0
      %113 = vmatpush1.bf16.msra.mxu0 %v110
      %114 = vmatprep.subr.bf16.mxu0 0
      %115 = vmatpush1.bf16.msra.mxu0 0
      %116 = vmatprep.subr.bf16.mxu0 0
      %117 = vmatpush1.bf16.msra.mxu0 0
      %118 = vmatprep.subr.bf16.mxu0 0
      %119 = vmatpush1.bf16.msra.mxu0 0
      %120 = vmatprep.subr.bf16.mxu0 0
      %121 = vmatpush1.bf16.msra.mxu0 0
      %122 = vmatprep.subr.bf16.mxu0 0
      %123 = vmatpush1.bf16.msra.mxu0 0
      %124 = vmatprep.subr.bf16.mxu0 0
      %125 = vmatpush1.bf16.msra.mxu0 0
      %126 = vmatprep.subr.bf16.mxu0 0
      %127 = vmatpush1.bf16.msra.mxu0 0
      %128 = vmatprep.subr.bf16.mxu0 0
      %129 = vmatpush1.bf16.msra.mxu0 0
      %130 = vmatprep.subr.bf16.mxu0 0
      %131 = vmatpush1.bf16.msra.mxu0 0
      %132 = vmatprep.subr.bf16.mxu0 0
      %133 = vmatpush1.bf16.msra.mxu0 0
      %134 = vmatprep.subr.bf16.mxu0 0
      %135 = vmatpush1.bf16.msra.mxu0 0
      %136 = vmatprep.subr.bf16.mxu0 0
      %137 = vmatpush1.bf16.msra.mxu0 0
      %138 = vmatprep.subr.bf16.mxu0 0
      %139 = vmatpush1.bf16.msra.mxu0 0
      %140 = vmatprep.subr.bf16.mxu0 0
      %141 = vmatpush1.bf16.msra.mxu0 0
      %142 = vmatprep.subr.bf16.mxu0 0
      %143 = vmatpush1.bf16.msra.mxu0 0
      %144 = vmatprep.mubr.bf16.mxu0 0
      %145 = vmatmul.mubr.bf16.gmra.mrb[0].mxu0 %v106
      %v146 = vpop.f32.mrb[0].mxu0
      %v147 = vadd.f32 %v103, %v146
      %v148 = vpop.f32.mrb[0].mxu0
      %v149 = vpop.f32.mrb[0].mxu0
      %v150 = vpop.f32.mrb[0].mxu0
      %151 = vdwg.mxu0
      %v152 = vmax.f32 %v147, 0.0
      %v153 = vadd.f32 %v98, %v152
      %vm154 = vcmask 130048
      %155 = vst.msk [vmem:[#allocation2] sm:$0xff] %vm154, %v153
      %v156 = vld [vmem:[#allocation2] sm:$0xff]
      %v157 = vld [vmem:[#allocation11] sm:$0x1]
      %v158 = vlaneseq
      %v159 = vshrl.u32 %v158, 7
      %v160 = vsub.s32 0, %v159
      %v161 = vrot.slane %v157, %v160
      %v163 = vunpack.c.l.b16 %v97
      %v164 = vpack.c.b16 %v163, %v163
      %165 = vrot.lane.b32.xlu0 %v164, 112
      %v166 = vpop.permute.xlu0 %165
      %v168 = vsel %vm104, %v96, 0
      %v171 = vsel %vm108, %v166, 0
      %173 = vmatprep.subr.bf16.mxu0 0
      %174 = vmatpush1.bf16.msra.mxu0 %v171
      %175 = vmatprep.subr.bf16.mxu0 0
      %176 = vmatpush1.bf16.msra.mxu0 0
      %177 = vmatprep.subr.bf16.mxu0 0
      %178 = vmatpush1.bf16.msra.mxu0 0
      %179 = vmatprep.subr.bf16.mxu0 0
      %180 = vmatpush1.bf16.msra.mxu0 0
      %181 = vmatprep.subr.bf16.mxu0 0
      %182 = vmatpush1.bf16.msra.mxu0 0
      %183 = vmatprep.subr.bf16.mxu0 0
      %184 = vmatpush1.bf16.msra.mxu0 0
      %185 = vmatprep.subr.bf16.mxu0 0
      %186 = vmatpush1.bf16.msra.mxu0 0
      %187 = vmatprep.subr.bf16.mxu0 0
      %188 = vmatpush1.bf16.msra.mxu0 0
      %189 = vmatprep.subr.bf16.mxu0 0
      %190 = vmatpush1.bf16.msra.mxu0 0
      %191 = vmatprep.subr.bf16.mxu0 0
      %192 = vmatpush1.bf16.msra.mxu0 0
      %193 = vmatprep.subr.bf16.mxu0 0
      %194 = vmatpush1.bf16.msra.mxu0 0
      %195 = vmatprep.subr.bf16.mxu0 0
      %196 = vmatpush1.bf16.msra.mxu0 0
      %197 = vmatprep.subr.bf16.mxu0 0
      %198 = vmatpush1.bf16.msra.mxu0 0
      %199 = vmatprep.subr.bf16.mxu0 0
      %200 = vmatpush1.bf16.msra.mxu0 0
      %201 = vmatprep.subr.bf16.mxu0 0
      %202 = vmatpush1.bf16.msra.mxu0 0
      %203 = vmatprep.subr.bf16.mxu0 0
      %204 = vmatpush1.bf16.msra.mxu0 0
      %205 = vmatprep.mubr.bf16.mxu0 0
      %206 = vmatmul.mubr.bf16.gmra.mrb[0].mxu0 %v168
      %v207 = vpop.f32.mrb[0].mxu0
      %v208 = vadd.f32 %v161, %v207
      %v209 = vpop.f32.mrb[0].mxu0
      %v210 = vpop.f32.mrb[0].mxu0
      %v211 = vpop.f32.mrb[0].mxu0
      %212 = vdwg.mxu0
      %v213 = vmax.f32 %v208, 0.0
      %215 = vrot.lane.b32.xlu0 %v213, 16
      %v216 = vpop.permute.xlu0 %215
      %v218 = vadd.f32 %v156, %v216
      %vm219 = vcmask 261248
      %220 = vst.msk [vmem:[#allocation2] sm:$0xff] %vm219, %v218
    $region53: #{tpu_custom_call.1} parent=1 // pred_fallthru
      _
    %s221 = sld [smem:[#allocation4]]
    %p222 = scmp.eq.s32.totalorder %s221, 0
    // Predicated region
    $region54: #{tpu_custom_call.1} parent=1 // pred_check
      %p223 = pneg %p222
    $region55: #{tpu_custom_call.1} parent=1 // pred_check_branch
      %225 = sbr.rel (%p223) target = $region57
    $region56: #{tpu_custom_call.1} parent=1 // pred_region
      %v226 = vld [vmem:[#allocation2] sm:$0xff]
      %v227 = vadd.f32 %v226, %v85
      %228 = vst.msk [vmem:[#allocation2] sm:$0xff] %vm86, %v227
    $region57: #{tpu_custom_call.1} parent=1 // pred_fallthru
      _
    %s229 = sld [smem:[#allocation4 + $0x1]]
    %p230 = scmp.ne.s32.totalorder %s229, 0
    // Predicated region
    $region58: #{tpu_custom_call.1} parent=1 // pred_check
      %p231 = pneg %p230
    $region59: #{tpu_custom_call.1} parent=1 // pred_check_branch
      %233 = sbr.rel (%p231) target = $region61
    $region60: #{tpu_custom_call.1} parent=1 // pred_region
      %s234 = scalar_lea.vmem [#allocation8], 2
      %v235 = vld [vmem:[%s234] sm:$0x3]
      %v236 = vunpack.c.l.s8.bf16 %v235
      %s237 = scalar_lea.vmem %s2, 2
      %v238 = vld [vmem:[%s237] sm:$0x3]
      %v239 = vunpack.c.l.s8.bf16 %v238
      %v240 = vld [vmem:[%s4] sm:$0xf]
      %v241 = vld [vmem:[#allocation2] sm:$0xff]
      %v242 = vld [vmem:[#allocation10 + $0x1] sm:$0x1]
      %v243 = vlaneseq
      %v244 = vshrl.u32 %v243, 7
      %v245 = vsub.s32 0, %v244
      %v246 = vrot.slane %v242, %v245
      %v248 = vunpack.c.l.b16 %v240
      %v249 = vpack.c.b16 %v248, %v248
      %250 = vrot.lane.b32.xlu0 %v249, 96
      %v251 = vpop.permute.xlu0 %250
      %vm252 = vcmask 64512
      %v254 = vsel %vm252, %v236, 0
      %vm256 = vcmask 1043456
      %v258 = vsel %vm256, %v251, 0
      %260 = vmatprep.subr.bf16.mxu0 0
      %261 = vmatpush1.bf16.msra.mxu0 %v258
      %262 = vmatprep.subr.bf16.mxu0 0
      %263 = vmatpush1.bf16.msra.mxu0 0
      %264 = vmatprep.subr.bf16.mxu0 0
      %265 = vmatpush1.bf16.msra.mxu0 0
      %266 = vmatprep.subr.bf16.mxu0 0
      %267 = vmatpush1.bf16.msra.mxu0 0
      %268 = vmatprep.subr.bf16.mxu0 0
      %269 = vmatpush1.bf16.msra.mxu0 0
      %270 = vmatprep.subr.bf16.mxu0 0
      %271 = vmatpush1.bf16.msra.mxu0 0
      %272 = vmatprep.subr.bf16.mxu0 0
      %273 = vmatpush1.bf16.msra.mxu0 0
      %274 = vmatprep.subr.bf16.mxu0 0
      %275 = vmatpush1.bf16.msra.mxu0 0
      %276 = vmatprep.subr.bf16.mxu0 0
      %277 = vmatpush1.bf16.msra.mxu0 0
      %278 = vmatprep.subr.bf16.mxu0 0
      %279 = vmatpush1.bf16.msra.mxu0 0
      %280 = vmatprep.subr.bf16.mxu0 0
      %281 = vmatpush1.bf16.msra.mxu0 0
      %282 = vmatprep.subr.bf16.mxu0 0
      %283 = vmatpush1.bf16.msra.mxu0 0
      %284 = vmatprep.subr.bf16.mxu0 0
      %285 = vmatpush1.bf16.msra.mxu0 0
      %286 = vmatprep.subr.bf16.mxu0 0
      %287 = vmatpush1.bf16.msra.mxu0 0
      %288 = vmatprep.subr.bf16.mxu0 0
      %289 = vmatpush1.bf16.msra.mxu0 0
      %290 = vmatprep.subr.bf16.mxu0 0
      %291 = vmatpush1.bf16.msra.mxu0 0
      %292 = vmatprep.mubr.bf16.mxu0 0
      %293 = vmatmul.mubr.bf16.gmra.mrb[0].mxu0 %v254
      %v294 = vpop.f32.mrb[0].mxu0
      %v295 = vadd.f32 %v246, %v294
      %v296 = vpop.f32.mrb[0].mxu0
      %v297 = vpop.f32.mrb[0].mxu0
      %v298 = vpop.f32.mrb[0].mxu0
      %299 = vdwg.mxu0
      %v300 = vmax.f32 %v295, 0.0
      %v301 = vadd.f32 %v241, %v300
      %vm302 = vcmask 130048
      %303 = vst.msk [vmem:[#allocation2] sm:$0xff] %vm302, %v301
      %v304 = vld [vmem:[#allocation2] sm:$0xff]
      %v305 = vld [vmem:[#allocation11 + $0x1] sm:$0x1]
      %v306 = vlaneseq
      %v307 = vshrl.u32 %v306, 7
      %v308 = vsub.s32 0, %v307
      %v309 = vrot.slane %v305, %v308
      %310 = vrot.lane.b32.xlu0 %v249, 80
      %v311 = vpop.permute.xlu0 %310
      %v313 = vsel %vm252, %v239, 0
      %v316 = vsel %vm256, %v311, 0
      %318 = vmatprep.subr.bf16.mxu0 0
      %319 = vmatpush1.bf16.msra.mxu0 %v316
      %320 = vmatprep.subr.bf16.mxu0 0
      %321 = vmatpush1.bf16.msra.mxu0 0
      %322 = vmatprep.subr.bf16.mxu0 0
      %323 = vmatpush1.bf16.msra.mxu0 0
      %324 = vmatprep.subr.bf16.mxu0 0
      %325 = vmatpush1.bf16.msra.mxu0 0
      %326 = vmatprep.subr.bf16.mxu0 0
      %327 = vmatpush1.bf16.msra.mxu0 0
      %328 = vmatprep.subr.bf16.mxu0 0
      %329 = vmatpush1.bf16.msra.mxu0 0
      %330 = vmatprep.subr.bf16.mxu0 0
      %331 = vmatpush1.bf16.msra.mxu0 0
      %332 = vmatprep.subr.bf16.mxu0 0
      %333 = vmatpush1.bf16.msra.mxu0 0
      %334 = vmatprep.subr.bf16.mxu0 0
      %335 = vmatpush1.bf16.msra.mxu0 0
      %336 = vmatprep.subr.bf16.mxu0 0
      %337 = vmatpush1.bf16.msra.mxu0 0
      %338 = vmatprep.subr.bf16.mxu0 0
      %339 = vmatpush1.bf16.msra.mxu0 0
      %340 = vmatprep.subr.bf16.mxu0 0
      %341 = vmatpush1.bf16.msra.mxu0 0
      %342 = vmatprep.subr.bf16.mxu0 0
      %343 = vmatpush1.bf16.msra.mxu0 0
      %344 = vmatprep.subr.bf16.mxu0 0
      %345 = vmatpush1.bf16.msra.mxu0 0
      %346 = vmatprep.subr.bf16.mxu0 0
      %347 = vmatpush1.bf16.msra.mxu0 0
      %348 = vmatprep.subr.bf16.mxu0 0
      %349 = vmatpush1.bf16.msra.mxu0 0
      %350 = vmatprep.mubr.bf16.mxu0 0
      %351 = vmatmul.mubr.bf16.gmra.mrb[0].mxu0 %v313
      %v352 = vpop.f32.mrb[0].mxu0
      %v353 = vadd.f32 %v309, %v352
      %v354 = vpop.f32.mrb[0].mxu0
      %v355 = vpop.f32.mrb[0].mxu0
      %v356 = vpop.f32.mrb[0].mxu0
      %357 = vdwg.mxu0
      %v358 = vmax.f32 %v353, 0.0
      %360 = vrot.lane.b32.xlu0 %v358, 16
      %v361 = vpop.permute.xlu0 %360
      %v363 = vadd.f32 %v304, %v361
      %vm364 = vcmask 261248
      %365 = vst.msk [vmem:[#allocation2] sm:$0xff] %vm364, %v363
    $region61: #{tpu_custom_call.1} parent=1 // pred_fallthru
      _
    %s366 = sld [smem:[#allocation4 + $0x1]]
    %p367 = scmp.eq.s32.totalorder %s366, 0
    // Predicated region
    $region62: #{tpu_custom_call.1} parent=1 // pred_check
      %p368 = pneg %p367
    $region63: #{tpu_custom_call.1} parent=1 // pred_check_branch
      %370 = sbr.rel (%p368) target = $region65
    $region64: #{tpu_custom_call.1} parent=1 // pred_region
      %v371 = vld [vmem:[#allocation2] sm:$0xff]
      %v372 = vadd.f32 %v371, %v85
      %373 = vst.msk [vmem:[#allocation2] sm:$0xff] %vm86, %v372
    $region65: #{tpu_custom_call.1} parent=1 // pred_fallthru
      _
    %s374 = sld [smem:[#allocation4 + $0x2]]
    %p375 = scmp.ne.s32.totalorder %s374, 0
    // Predicated region
    $region66: #{tpu_custom_call.1} parent=1 // pred_check
      %p376 = pneg %p375
    $region67: #{tpu_custom_call.1} parent=1 // pred_check_branch
      %378 = sbr.rel (%p376) target = $region69
    $region68: #{tpu_custom_call.1} parent=1 // pred_region
      %s379 = scalar_lea.vmem [#allocation8], 4
      %v380 = vld [vmem:[%s379] sm:$0x3]
      %v381 = vunpack.c.l.s8.bf16 %v380
      %s382 = scalar_lea.vmem %s2, 4
      %v383 = vld [vmem:[%s382] sm:$0x3]
      %v384 = vunpack.c.l.s8.bf16 %v383
      %v385 = vld [vmem:[%s4] sm:$0xf]
      %v386 = vld [vmem:[#allocation2] sm:$0xff]
      %v387 = vld [vmem:[#allocation10 + $0x2] sm:$0x1]
      %v388 = vlaneseq
      %v389 = vshrl.u32 %v388, 7
      %v390 = vsub.s32 0, %v389
      %v391 = vrot.slane %v387, %v390
      %v393 = vunpack.c.l.b16 %v385
      %v394 = vpack.c.b16 %v393, %v393
      %395 = vrot.lane.b32.xlu0 %v394, 64
      %v396 = vpop.permute.xlu0 %395
      %vm397 = vcmask 64512
      %v399 = vsel %vm397, %v381, 0
      %vm401 = vcmask 1043456
      %v403 = vsel %vm401, %v396, 0
      %405 = vmatprep.subr.bf16.mxu0 0
      %406 = vmatpush1.bf16.msra.mxu0 %v403
      %407 = vmatprep.subr.bf16.mxu0 0
      %408 = vmatpush1.bf16.msra.mxu0 0
      %409 = vmatprep.subr.bf16.mxu0 0
      %410 = vmatpush1.bf16.msra.mxu0 0
      %411 = vmatprep.subr.bf16.mxu0 0
      %412 = vmatpush1.bf16.msra.mxu0 0
      %413 = vmatprep.subr.bf16.mxu0 0
      %414 = vmatpush1.bf16.msra.mxu0 0
      %415 = vmatprep.subr.bf16.mxu0 0
      %416 = vmatpush1.bf16.msra.mxu0 0
      %417 = vmatprep.subr.bf16.mxu0 0
      %418 = vmatpush1.bf16.msra.mxu0 0
      %419 = vmatprep.subr.bf16.mxu0 0
      %420 = vmatpush1.bf16.msra.mxu0 0
      %421 = vmatprep.subr.bf16.mxu0 0
      %422 = vmatpush1.bf16.msra.mxu0 0
      %423 = vmatprep.subr.bf16.mxu0 0
      %424 = vmatpush1.bf16.msra.mxu0 0
      %425 = vmatprep.subr.bf16.mxu0 0
      %426 = vmatpush1.bf16.msra.mxu0 0
      %427 = vmatprep.subr.bf16.mxu0 0
      %428 = vmatpush1.bf16.msra.mxu0 0
      %429 = vmatprep.subr.bf16.mxu0 0
      %430 = vmatpush1.bf16.msra.mxu0 0
      %431 = vmatprep.subr.bf16.mxu0 0
      %432 = vmatpush1.bf16.msra.mxu0 0
      %433 = vmatprep.subr.bf16.mxu0 0
      %434 = vmatpush1.bf16.msra.mxu0 0
      %435 = vmatprep.subr.bf16.mxu0 0
      %436 = vmatpush1.bf16.msra.mxu0 0
      %437 = vmatprep.mubr.bf16.mxu0 0
      %438 = vmatmul.mubr.bf16.gmra.mrb[0].mxu0 %v399
      %v439 = vpop.f32.mrb[0].mxu0
      %v440 = vadd.f32 %v391, %v439
      %v441 = vpop.f32.mrb[0].mxu0
      %v442 = vpop.f32.mrb[0].mxu0
      %v443 = vpop.f32.mrb[0].mxu0
      %444 = vdwg.mxu0
      %v445 = vmax.f32 %v440, 0.0
      %v446 = vadd.f32 %v386, %v445
      %vm447 = vcmask 130048
      %448 = vst.msk [vmem:[#allocation2] sm:$0xff] %vm447, %v446
      %v449 = vld [vmem:[#allocation2] sm:$0xff]
      %v450 = vld [vmem:[#allocation11 + $0x2] sm:$0x1]
      %v451 = vlaneseq
      %v452 = vshrl.u32 %v451, 7
      %v453 = vsub.s32 0, %v452
      %v454 = vrot.slane %v450, %v453
      %455 = vrot.lane.b32.xlu0 %v394, 48
      %v456 = vpop.permute.xlu0 %455
      %v458 = vsel %vm397, %v384, 0
      %v461 = vsel %vm401, %v456, 0
      %463 = vmatprep.subr.bf16.mxu0 0
      %464 = vmatpush1.bf16.msra.mxu0 %v461
      %465 = vmatprep.subr.bf16.mxu0 0
      %466 = vmatpush1.bf16.msra.mxu0 0
      %467 = vmatprep.subr.bf16.mxu0 0
      %468 = vmatpush1.bf16.msra.mxu0 0
      %469 = vmatprep.subr.bf16.mxu0 0
      %470 = vmatpush1.bf16.msra.mxu0 0
      %471 = vmatprep.subr.bf16.mxu0 0
      %472 = vmatpush1.bf16.msra.mxu0 0
      %473 = vmatprep.subr.bf16.mxu0 0
      %474 = vmatpush1.bf16.msra.mxu0 0
      %475 = vmatprep.subr.bf16.mxu0 0
      %476 = vmatpush1.bf16.msra.mxu0 0
      %477 = vmatprep.subr.bf16.mxu0 0
      %478 = vmatpush1.bf16.msra.mxu0 0
      %479 = vmatprep.subr.bf16.mxu0 0
      %480 = vmatpush1.bf16.msra.mxu0 0
      %481 = vmatprep.subr.bf16.mxu0 0
      %482 = vmatpush1.bf16.msra.mxu0 0
      %483 = vmatprep.subr.bf16.mxu0 0
      %484 = vmatpush1.bf16.msra.mxu0 0
      %485 = vmatprep.subr.bf16.mxu0 0
      %486 = vmatpush1.bf16.msra.mxu0 0
      %487 = vmatprep.subr.bf16.mxu0 0
      %488 = vmatpush1.bf16.msra.mxu0 0
      %489 = vmatprep.subr.bf16.mxu0 0
      %490 = vmatpush1.bf16.msra.mxu0 0
      %491 = vmatprep.subr.bf16.mxu0 0
      %492 = vmatpush1.bf16.msra.mxu0 0
      %493 = vmatprep.subr.bf16.mxu0 0
      %494 = vmatpush1.bf16.msra.mxu0 0
      %495 = vmatprep.mubr.bf16.mxu0 0
      %496 = vmatmul.mubr.bf16.gmra.mrb[0].mxu0 %v458
      %v497 = vpop.f32.mrb[0].mxu0
      %v498 = vadd.f32 %v454, %v497
      %v499 = vpop.f32.mrb[0].mxu0
      %v500 = vpop.f32.mrb[0].mxu0
      %v501 = vpop.f32.mrb[0].mxu0
      %502 = vdwg.mxu0
      %v503 = vmax.f32 %v498, 0.0
      %505 = vrot.lane.b32.xlu0 %v503, 16
      %v506 = vpop.permute.xlu0 %505
      %v508 = vadd.f32 %v449, %v506
      %vm509 = vcmask 261248
      %510 = vst.msk [vmem:[#allocation2] sm:$0xff] %vm509, %v508
    $region69: #{tpu_custom_call.1} parent=1 // pred_fallthru
      _
    %s511 = sld [smem:[#allocation4 + $0x2]]
    %p512 = scmp.eq.s32.totalorder %s511, 0
    // Predicated region
    $region70: #{tpu_custom_call.1} parent=1 // pred_check
      %p513 = pneg %p512
    $region71: #{tpu_custom_call.1} parent=1 // pred_check_branch
      %515 = sbr.rel (%p513) target = $region73
    $region72: #{tpu_custom_call.1} parent=1 // pred_region
      %v516 = vld [vmem:[#allocation2] sm:$0xff]
      %v517 = vadd.f32 %v516, %v85
      %518 = vst.msk [vmem:[#allocation2] sm:$0xff] %vm86, %v517
    $region73: #{tpu_custom_call.1} parent=1 // pred_fallthru
      _
    %v519 = vld [vmem:[#allocation2] sm:$0xff]
    %v520 = vmax.f32 %v519, 0.0
    %v521 = vpack.c.bf16 %v520, %v520
    %v522 = vld [vmem:[%s7] sm:$0xf]
    %v523 = vld [vmem:[%s7 + $0x4] sm:$0xf]
    %v524 = vld [vmem:[%s7 + $0x8] sm:$0xf]
    %v525 = vld [vmem:[%s7 + $0xc] sm:$0xf]
    %v526 = vld [vmem:[%s8] sm:$0x1]
    %v528 = vlaneseq
    %v529 = vshrl.u32 %v528, 7
    %v530 = vsub.s32 0, %v529
    %v531 = vrot.slane %v526, %v530
    %v537 = vunpack.c.l.b16 %v522
    %v538 = vunpack.c.l.b16 %v523
    %v539 = vunpack.c.l.b16 %v524
    %v540 = vunpack.c.l.b16 %v525
    %v541 = vpack.c.b16 %v538, %v537
    %v542 = vpack.c.b16 %v540, %v539
    %v546 = vsel %vm86, %v521, 0
    %548 = vmatprep.subr.bf16.mxu0 0
    %549 = vmatpush1.bf16.msra.mxu0 %v541
    %550 = vmatprep.subr.bf16.mxu0 0
    %551 = vmatpush1.bf16.msra.mxu0 %v542
    %552 = vmatprep.subr.bf16.mxu0 0
    %553 = vmatpush1.bf16.msra.mxu0 0
    %554 = vmatprep.subr.bf16.mxu0 0
    %555 = vmatpush1.bf16.msra.mxu0 0
    %556 = vmatprep.subr.bf16.mxu0 0
    %557 = vmatpush1.bf16.msra.mxu0 0
    %558 = vmatprep.subr.bf16.mxu0 0
    %559 = vmatpush1.bf16.msra.mxu0 0
    %560 = vmatprep.subr.bf16.mxu0 0
    %561 = vmatpush1.bf16.msra.mxu0 0
    %562 = vmatprep.subr.bf16.mxu0 0
    %563 = vmatpush1.bf16.msra.mxu0 0
    %564 = vmatprep.subr.bf16.mxu0 0
    %565 = vmatpush1.bf16.msra.mxu0 0
    %566 = vmatprep.subr.bf16.mxu0 0
    %567 = vmatpush1.bf16.msra.mxu0 0
    %568 = vmatprep.subr.bf16.mxu0 0
    %569 = vmatpush1.bf16.msra.mxu0 0
    %570 = vmatprep.subr.bf16.mxu0 0
    %571 = vmatpush1.bf16.msra.mxu0 0
    %572 = vmatprep.subr.bf16.mxu0 0
    %573 = vmatpush1.bf16.msra.mxu0 0
    %574 = vmatprep.subr.bf16.mxu0 0
    %575 = vmatpush1.bf16.msra.mxu0 0
    %576 = vmatprep.subr.bf16.mxu0 0
    %577 = vmatpush1.bf16.msra.mxu0 0
    %578 = vmatprep.subr.bf16.mxu0 0
    %579 = vmatpush1.bf16.msra.mxu0 0
    %580 = vmatprep.mubr.bf16.mxu0 0
    %581 = vmatmul.mubr.bf16.gmra.mrb[0].mxu0 %v546
    %v582 = vpop.f32.mrb[0].mxu0
    %v583 = vadd.f32 %v531, %v582
    %v584 = vpop.f32.mrb[0].mxu0
    %v585 = vpop.f32.mrb[0].mxu0
    %v586 = vpop.f32.mrb[0].mxu0
    %587 = vdwg.mxu0
    %v588 = vadd.f32 %v583, %v85
    %589 = vst.msk [vmem:[#allocation13] sm:$0xff] %vm86, %v588
    // Predicated region
    $region74: #{tpu_custom_call.1} parent=1 // pred_check
      _
    $region75: #{tpu_custom_call.1} parent=1 // pred_check_branch
      %591 = sbr.rel (0) target = $region77
    $region76: #{tpu_custom_call.1} parent=1 // pred_region
      %s593 = ssub.s32 128, 128
      %594 = vsyncadd [#allocation7], %s593
      %s596 = sshll.u32 [#allocation13], 4
      %s597 = int_to_ptr.vmem [resolvable:$true] %s596
      %599 = dma.vmem_to_hbm [thread:$0]  %s597, 128, %s9, [#allocation7]
    $region77: #{tpu_custom_call.1} parent=1 // pred_fallthru
      _
    // Predicated region
    $region78: #{tpu_custom_call.1} parent=1 // pred_check
      _
    $region79: #{tpu_custom_call.1} parent=1 // pred_check_branch
      %601 = sbr.rel (0) target = $region81
    $region80: #{tpu_custom_call.1} parent=1 // pred_region
      %602 = dma.done [#allocation7], 128
    $region81: #{tpu_custom_call.1} parent=1 // pred_fallthru
      _
    %603 = vsyncpa [#allocation6], 1
    %604 = vsyncpa [#allocation9], 1
    %605 = vsyncpa [#allocation12], 1
    %606 = vsyncpa [#allocation7], 1

</llo_original>
